<compile_context>
chip_gen: v6e
topology: v6e:2x2x1
jax: 0.10.0
libtpu: 0.0.40
codegen_flags: <defaults>
</compile_context>

<pallas_src>
import functools

import jax
import jax.numpy as jnp
from jax import lax
from jax.experimental import pallas as pl
from jax.experimental.pallas import tpu as pltpu

LANES = 128
SUBLANES = 8


def _round_up(v, m):
    return ((v + m - 1) // m) * m


def _bce_partial_kernel(x_ref, t_ref, o_ref, *, tile_rows, valid_rows, mask_rows):
    """Per-block BCE partial sums.

    x_ref/t_ref: (tile_rows, 128) native dtype; o_ref: (1, 8, 128) f32 partials.
    """
    x = x_ref[...].astype(jnp.float32)
    t = t_ref[...].astype(jnp.float32)

    # Stable shared-softplus formulation (2 EUP ops/elem instead of 4):
    #   -log(sigmoid(x))     = max(-x, 0) + log1p(exp(-|x|))
    #   -log(1 - sigmoid(x)) = max( x, 0) + log1p(exp(-|x|))
    # PyTorch's F.binary_cross_entropy clamps each log term at -100, i.e. each
    # -log term at 100, reproduced with the per-term min().
    sp = jnp.log1p(jnp.exp(-jnp.abs(x)))
    pos = jnp.minimum(jnp.maximum(-x, 0.0) + sp, 100.0)   # -log(p),     clamped
    neg = jnp.minimum(jnp.maximum(x, 0.0) + sp, 100.0)    # -log(1 - p), clamped
    loss = t * pos + (1.0 - t) * neg

    if mask_rows:
        # Ragged last block: rows past `valid_rows` hold garbage from the partial
        # DMA; select them to 0. Pure VPU compare+select (free on a mem-bound
        # kernel), so it is applied unconditionally rather than gated per-block.
        row = pl.program_id(0) * tile_rows + lax.broadcasted_iota(
            jnp.int32, loss.shape, 0)
        loss = jnp.where(row < valid_rows, loss, 0.0)

    # Reduce rows within this block down to an (8,128) lane-dense partial sum
    # (VPU adds across vregs; cross-lane reduction deferred to the wrapper).
    o_ref[0] = jnp.sum(
        loss.reshape(tile_rows // SUBLANES, SUBLANES, LANES), axis=0)


def bce_loss(input_arr, target_arr, *, tile_rows=2048):
    """Equivalent of BCELoss().forward(input, target) (sigmoid + BCE, mean)."""
    x = jnp.ravel(input_arr)
    t = jnp.ravel(target_arr)
    n = int(x.shape[0])

    # --- Lane alignment (rare path). Only when n is not a multiple of 128 (or the
    # input is tinier than one (8,128) block) do we pad, and only up to the next
    # 128 multiple / 8 rows. Pad values (x=+100, t=1) contribute exactly 0 loss,
    # so no mask or extra HBM stream is needed for them. The common lane-aligned
    # case is completely copy-free (ravel + reshape are free for contiguous data).
    padded_n = _round_up(n, LANES)
    if padded_n // LANES < SUBLANES:
        padded_n = SUBLANES * LANES
    pad = padded_n - n
    if pad:
        x = jnp.pad(x, (0, pad), constant_values=100.0)
        t = jnp.pad(t, (0, pad), constant_values=1.0)

    rows = padded_n // LANES
    x2 = x.reshape(rows, LANES)
    t2 = t.reshape(rows, LANES)

    # --- Tile selection: as large as tile_rows (amortizes per-step pipeline
    # overhead), but split mid-sized inputs into >=2 blocks so both v7x
    # TensorCores get work under the "parallel" grid axis.
    tile_rows = max(SUBLANES, (tile_rows // SUBLANES) * SUBLANES)
    half = _round_up((rows + 1) // 2, SUBLANES)
    tr = max(SUBLANES, min(tile_rows, half))
    num_blocks = -(-rows // tr)

    # Row-raggedness (rows not a multiple of tr) handled in-kernel -> no full
    # jnp.pad copy of large inputs whose size isn't a tile multiple.
    mask_rows = (num_blocks * tr) != rows

    kernel = functools.partial(
        _bce_partial_kernel, tile_rows=tr, valid_rows=rows, mask_rows=mask_rows)

    tile_spec = pl.BlockSpec((tr, LANES), lambda i: (i, 0))

    out_bytes = num_blocks * SUBLANES * LANES * 4
    cost = pl.CostEstimate(
        flops=10 * n,
        transcendentals=2 * n,
        bytes_accessed=n * (x2.dtype.itemsize + t2.dtype.itemsize) + out_bytes,
    )

    partials = pl.pallas_call(
        kernel,
        out_shape=jax.ShapeDtypeStruct((num_blocks, SUBLANES, LANES), jnp.float32),
        grid_spec=pl.GridSpec(
            grid=(num_blocks,),
            in_specs=[tile_spec, tile_spec],
            out_specs=pl.BlockSpec((1, SUBLANES, LANES), lambda i: (i, 0, 0)),
        ),
        compiler_params=pltpu.CompilerParams(
            # Per-block outputs -> no cross-iteration accumulator, so the grid
            # axis is race-free "parallel" (shards across TCs on v7x, no-op on
            # v5e/v6e).
            dimension_semantics=("parallel",),
            # ~4 MiB of double-buffered f32 input tiles at tr=2048 plus a few MiB
            # of elementwise intermediates. 32 MiB matches the v6e/v7x scoped
            # default and raises v5e's 16 MiB default so the same tile runs on
            # every generation without spills.
            vmem_limit_bytes=32 * 1024 * 1024,
        ),
        cost_estimate=cost,
    )(x2, t2)

    # Tiny final cross-lane reduction + mean in the wrapper; divide by the
    # *original* element count.
    return jnp.sum(partials) / jnp.float32(n)


def _reference_bce(x, t):
    # Same math as PyTorch: sigmoid + binary_cross_entropy with the -100 log clamp.
    p = jax.nn.sigmoid(jnp.ravel(x).astype(jnp.float32))
    t = jnp.ravel(t).astype(jnp.float32)
    return jnp.mean(-(t * jnp.maximum(jnp.log(p), -100.0)
                      + (1.0 - t) * jnp.maximum(jnp.log1p(-p), -100.0)))


if __name__ == "__main__":
    key = jax.random.PRNGKey(0)
    k1, k2, k3, k4 = jax.random.split(key, 4)

    # Shapes consistent with a conv-style prediction: NCHW = (2, 4, 16, 16).
    x = jax.random.normal(k1, (2, 4, 16, 16), dtype=jnp.float32)
    target = (jax.random.uniform(k2, (2, 4, 16, 16)) > 0.5).astype(jnp.float32)

    loss = bce_loss(x, target)
    jax.block_until_ready(loss)
    ref = _reference_bce(x, target)
    assert jnp.allclose(loss, ref, rtol=1e-5, atol=1e-6), (loss, ref)

    # Ragged shape: exercises the sub-128 lane remainder pad and the in-kernel
    # partial-last-block row mask.
    x_r = jax.random.normal(k3, (3, 439), dtype=jnp.float32)
    t_r = (jax.random.uniform(k4, (3, 439)) > 0.5).astype(jnp.float32)
    loss_r = bce_loss(x_r, t_r)
    jax.block_until_ready(loss_r)
    ref_r = _reference_bce(x_r, t_r)
    assert jnp.allclose(loss_r, ref_r, rtol=1e-5, atol=1e-6), (loss_r, ref_r)

    print("KERNEL_OK")
</pallas_src>

<mosaic_0001>
module attributes {stable_mosaic.version = 11 : i64} {
  func.func @_bce_partial_kernel(%arg0: i32, %arg1: memref<8x128xf32, #tpu.memory_space<vmem>>, %arg2: memref<8x128xf32, #tpu.memory_space<vmem>>, %arg3: memref<1x8x128xf32, #tpu.memory_space<vmem>>) attributes {dimension_semantics = [#tpu.dimension_semantics<parallel>], iteration_bounds = array<i64: 2>, scalar_prefetch = 0 : i64, scratch_operands = 0 : i64, tpu.core_type = #tpu.core_type<tc>, window_params = [{transform_indices = @transform_0, window_bounds = array<i64: 8, 128>}, {transform_indices = @transform_1, window_bounds = array<i64: 8, 128>}, {transform_indices = @transform_2, window_bounds = array<i64: 1, 8, 128>}]} {
    %c0 = arith.constant 0 : index
    %c0_0 = arith.constant 0 : index
    %0 = vector.load %arg1[%c0, %c0_0] : memref<8x128xf32, #tpu.memory_space<vmem>>, vector<8x128xf32>
    %c0_1 = arith.constant 0 : index
    %c0_2 = arith.constant 0 : index
    %1 = vector.load %arg2[%c0_1, %c0_2] : memref<8x128xf32, #tpu.memory_space<vmem>>, vector<8x128xf32>
    %2 = math.absf %0 : vector<8x128xf32>
    %cst = arith.constant 0.000000e+00 : f32
    %3 = vector.broadcast %cst : f32 to vector<8x128xf32>
    %4 = arith.subf %3, %2 : vector<8x128xf32>
    %5 = math.exp %4 : vector<8x128xf32>
    %6 = math.log1p %5 : vector<8x128xf32>
    %cst_3 = arith.constant 0.000000e+00 : f32
    %7 = vector.broadcast %cst_3 : f32 to vector<8x128xf32>
    %8 = arith.subf %7, %0 : vector<8x128xf32>
    %cst_4 = arith.constant 0.000000e+00 : f32
    %9 = vector.broadcast %cst_4 : f32 to vector<8x128xf32>
    %10 = arith.maximumf %8, %9 : vector<8x128xf32>
    %11 = arith.addf %10, %6 : vector<8x128xf32>
    %cst_5 = arith.constant 1.000000e+02 : f32
    %12 = vector.broadcast %cst_5 : f32 to vector<8x128xf32>
    %13 = arith.minimumf %11, %12 : vector<8x128xf32>
    %cst_6 = arith.constant 0.000000e+00 : f32
    %14 = vector.broadcast %cst_6 : f32 to vector<8x128xf32>
    %15 = arith.maximumf %0, %14 : vector<8x128xf32>
    %16 = arith.addf %15, %6 : vector<8x128xf32>
    %cst_7 = arith.constant 1.000000e+02 : f32
    %17 = vector.broadcast %cst_7 : f32 to vector<8x128xf32>
    %18 = arith.minimumf %16, %17 : vector<8x128xf32>
    %19 = arith.mulf %1, %13 : vector<8x128xf32>
    %cst_8 = arith.constant 1.000000e+00 : f32
    %20 = vector.broadcast %cst_8 : f32 to vector<8x128xf32>
    %21 = arith.subf %20, %1 : vector<8x128xf32>
    %22 = arith.mulf %21, %18 : vector<8x128xf32>
    %23 = arith.addf %19, %22 : vector<8x128xf32>
    %24 = vector.shape_cast %23 : vector<8x128xf32> to vector<1x8x128xf32>
    %cst_9 = arith.constant dense<0.000000e+00> : vector<8x128xf32>
    %25 = vector.multi_reduction <add>, %24, %cst_9 [0] : vector<1x8x128xf32> to vector<8x128xf32>
    %c0_10 = arith.constant 0 : index
    %c0_11 = arith.constant 0 : index
    %c0_12 = arith.constant 0 : index
    %26 = vector.load %arg3[%c0_10, %c0_11, %c0_12] : memref<1x8x128xf32, #tpu.memory_space<vmem>>, vector<1x8x128xf32>
    %27 = vector.shape_cast %26 : vector<1x8x128xf32> to vector<8x128xf32>
    %28 = vector.shape_cast %25 : vector<8x128xf32> to vector<1x8x128xf32>
    tpu.vector_store %arg3[%c0_10, %c0_11, %c0_12], %28 {strides = array<i32>} : memref<1x8x128xf32, #tpu.memory_space<vmem>>, vector<1x8x128xf32>,
    return
  }
  func.func @transform_0(%arg0: i32) -> (i32, i32) {
    %c0_i32 = arith.constant 0 : i32
    %c0_i32_0 = arith.constant 0 : i32
    return %arg0, %c0_i32 : i32, i32
  }
  func.func @transform_1(%arg0: i32) -> (i32, i32) {
    %c0_i32 = arith.constant 0 : i32
    %c0_i32_0 = arith.constant 0 : i32
    return %arg0, %c0_i32 : i32, i32
  }
  func.func @transform_2(%arg0: i32) -> (i32, i32, i32) {
    %c0_i32 = arith.constant 0 : i32
    %c0_i32_0 = arith.constant 0 : i32
    %c0_i32_1 = arith.constant 0 : i32
    return %arg0, %c0_i32, %c0_i32_0 : i32, i32, i32
  }
}

</mosaic_0001>

<llo_original>
// kernel: tpu_custom_call.1
$region0: #{tpu_custom_call.1}
  #allocation0 [shape = 'u32[]', space=smem, size = 0x4, offset = 0x4, fixed_abs, tag = 'smem constant byte address 0x4 - core index']
  #allocation1 [shape = 'u32[144,128]{1,0:T(1,128)}', space=vmem, size = 0x12000, scoped, tag = 'internal scratch']
  %s0 = inlined_call_operand.hbm [shape: f32[16,128], index: 0, kind: input, shape index: {}]
  %s1 = inlined_call_operand.hbm [shape: f32[16,128], index: 1, kind: input, shape index: {}]
  %s2 = inlined_call_operand.hbm [shape: f32[2,8,128], index: 2, kind: output, shape index: {}]
  %s3 = sld [smem:[#allocation0]]
  $region49: #{tpu_custom_call.1} parent=0
    _
  %s5 = ssub.s32 1, %s3
  %s6 = scalar_select 0, %s5, %s3
  $region1: #{tpu_custom_call.1} parent=0
    #allocation2 [shape = 'u8[8192]{0}', space=vmem, size = 0x2000, scoped, tag = 'input window, operand 0']
    #allocation3 [shape = 's32[2]{0}', space=sflag, size = 0x8, scoped, tag = 'scoped memory for tpu_custom_call.1']
    #allocation4 [shape = 's32[2]{0}', space=sflag, size = 0x8, scoped, tag = 'scoped memory for tpu_custom_call.1']
    #allocation5 [shape = 'u8[8192]{0}', space=vmem, size = 0x2000, scoped, tag = 'input window, operand 1']
    #allocation6 [shape = 's32[2]{0}', space=sflag, size = 0x8, scoped, tag = 'scoped memory for tpu_custom_call.1']
    #allocation7 [shape = 'u8[8192]{0}', space=vmem, size = 0x2000, scoped, tag = 'output window, operand 0']
    %7 = vsyncpa [#allocation3], 0
    %s8 = scalar_lea.sflag [#allocation3], 1
    %9 = vsyncpa %s8, 0
    %10 = vsyncpa [#allocation6], 0
    %s11 = scalar_lea.sflag [#allocation6], 1
    %12 = vsyncpa %s11, 0
    %13 = vsyncpa [#allocation4], 0
    %s14 = scalar_lea.sflag [#allocation4], 1
    %15 = vsyncpa %s14, 0
    loop: start=0, step=1, limit=4
    $region2: #{tpu_custom_call.1} parent=1 // loop_pre_header
      _
    $region3: #{tpu_custom_call.1} parent=1 // loop_header
      %s17 = sphi 0, %s21
      %p18 = scmp.ge.s32.totalorder %s17, 4
      %s27 = sphi 0, %s29
      %s30 = sphi 0, %s27
      %s31 = sphi 0, %s30
      %s47 = sphi 0, %s31
      %s53 = sphi 0, %s55
      %s56 = sphi 0, %s53
      %s57 = sphi 0, %s56
      %s73 = sphi 0, %s57
      %s79 = sphi 0, %s81
      %s82 = sphi 0, %s79
      %s83 = sphi 0, %s82
      %s99 = sphi 0, %s83
    $region4: #{tpu_custom_call.1} parent=1 // loop_header_branch
      %20 = sbr.rel (%p18) target = $region8
    $region5: #{tpu_custom_call.1} parent=1 // loop_body
      %s22 = ssub.s32 %s17, 1
      %s23 = ssub.s32 %s17, 2
      %s24 = sadd.s32 %s17, 1
      %s25 = ssub.s32 %s17, %s24
      %p26 = scmp.eq.s32.totalorder %s25, 0
      %s28 = sadd.s32 %s27, 1
      %s29 = scalar_select %p26, %s27, %s28
      %p32 = pneg %p26
      %p33 = scmp.eq.s32.totalorder %s17, 1
      %p34 = por %p32, %p33
      %p35 = scmp.ne.s32.totalorder %s27, %s30
      %p36 = scmp.eq.s32.totalorder %s17, 0
      %p37 = por %p35, %p36
      %p38 = scmp.ne.s32.totalorder %s27, %s30
      %p39 = scmp.eq.s32.totalorder %s22, 1
      %p40 = por %p38, %p39
      %p41 = scmp.ne.s32.totalorder %s30, %s31
      %p42 = scmp.eq.s32.totalorder %s22, 0
      %p43 = por %p41, %p42
      %p44 = scmp.ne.s32.totalorder %s30, %s31
      %p45 = scmp.eq.s32.totalorder %s23, 1
      %p46 = por %p44, %p45
      %p48 = scmp.ne.s32.totalorder %s31, %s47
      %p49 = scmp.eq.s32.totalorder %s23, 0
      %p50 = por %p48, %p49
      %s51 = ssub.s32 %s17, %s24
      %p52 = scmp.eq.s32.totalorder %s51, 0
      %s54 = sadd.s32 %s53, 1
      %s55 = scalar_select %p52, %s53, %s54
      %p58 = pneg %p52
      %p59 = scmp.eq.s32.totalorder %s17, 1
      %p60 = por %p58, %p59
      %p61 = scmp.ne.s32.totalorder %s53, %s56
      %p62 = scmp.eq.s32.totalorder %s17, 0
      %p63 = por %p61, %p62
      %p64 = scmp.ne.s32.totalorder %s53, %s56
      %p65 = scmp.eq.s32.totalorder %s22, 1
      %p66 = por %p64, %p65
      %p67 = scmp.ne.s32.totalorder %s56, %s57
      %p68 = scmp.eq.s32.totalorder %s22, 0
      %p69 = por %p67, %p68
      %p70 = scmp.ne.s32.totalorder %s56, %s57
      %p71 = scmp.eq.s32.totalorder %s23, 1
      %p72 = por %p70, %p71
      %p74 = scmp.ne.s32.totalorder %s57, %s73
      %p75 = scmp.eq.s32.totalorder %s23, 0
      %p76 = por %p74, %p75
      %s77 = ssub.s32 %s17, %s24
      %p78 = scmp.eq.s32.totalorder %s77, 0
      %s80 = sadd.s32 %s79, 1
      %s81 = scalar_select %p78, %s79, %s80
      %p84 = pneg %p78
      %p85 = scmp.eq.s32.totalorder %s17, 1
      %p86 = por %p84, %p85
      %p87 = scmp.ne.s32.totalorder %s79, %s82
      %p88 = scmp.eq.s32.totalorder %s17, 0
      %p89 = por %p87, %p88
      %p90 = scmp.ne.s32.totalorder %s79, %s82
      %p91 = scmp.eq.s32.totalorder %s22, 1
      %p92 = por %p90, %p91
      %p93 = scmp.ne.s32.totalorder %s82, %s83
      %p94 = scmp.eq.s32.totalorder %s22, 0
      %p95 = por %p93, %p94
      %p96 = scmp.ne.s32.totalorder %s82, %s83
      %p97 = scmp.eq.s32.totalorder %s23, 1
      %p98 = por %p96, %p97
      %p100 = scmp.ne.s32.totalorder %s83, %s99
      %p101 = scmp.eq.s32.totalorder %s23, 0
      %p102 = por %p100, %p101
      %p103 = scmp.le.s32.totalorder 1, %s17
      %p104 = scmp.lt.s32.totalorder %s17, 3
      %p105 = pnand %p103, %p104
      %p106 = pneg %p105
      // Predicated region
      $region9: #{tpu_custom_call.1} parent=5 // pred_check
        _
      $region10: #{tpu_custom_call.1} parent=5 // pred_check_branch
        %108 = sbr.rel (%p105) target = $region12
      $region11: #{tpu_custom_call.1} parent=5 // pred_region
        %s109 = ssub.s32 %s17, 1
      $region12: #{tpu_custom_call.1} parent=5 // pred_fallthru
        _
      %p110 = scmp.lt.s32.totalorder %s17, 2
      // Predicated region
      $region13: #{tpu_custom_call.1} parent=5 // pred_check
        %p111 = pneg %p110
      $region14: #{tpu_custom_call.1} parent=5 // pred_check_branch
        %113 = sbr.rel (%p111) target = $region16
      $region15: #{tpu_custom_call.1} parent=5 // pred_region
        // Predicated region
        $region17: #{tpu_custom_call.1} parent=15 // pred_check
          %p114 = pneg %p37
        $region18: #{tpu_custom_call.1} parent=15 // pred_check_branch
          %116 = sbr.rel (%p114) target = $region20
        $region19: #{tpu_custom_call.1} parent=15 // pred_region
          %s117 = sand.u32 %s27, 1
          %s118 = scalar_lea.sflag [#allocation3], %s117
          %s119 = sand.u32 %s27, 1
          %s120 = smul.addr %s119, 8
          %s121 = scalar_lea.vmem [#allocation2], %s120
          %s123 = ssub.s32 128, 128
          %124 = vsyncadd %s118, %s123
          %s125 = smul.addr %s17, 128
          %s126 = scalar_lea.hbm %s0, %s125
          %s128 = sshll.u32 %s121, 4
          %s129 = int_to_ptr.vmem [resolvable:$true] %s128
          %131 = dma.hbm_to_vmem [thread:$0]  %s126, 128, %s129, %s118
        $region20: #{tpu_custom_call.1} parent=15 // pred_fallthru
          _
        // Predicated region
        $region21: #{tpu_custom_call.1} parent=15 // pred_check
          %p132 = pneg %p63
        $region22: #{tpu_custom_call.1} parent=15 // pred_check_branch
          %134 = sbr.rel (%p132) target = $region24
        $region23: #{tpu_custom_call.1} parent=15 // pred_region
          %s135 = sand.u32 %s53, 1
          %s136 = scalar_lea.sflag [#allocation6], %s135
          %s137 = sand.u32 %s53, 1
          %s138 = smul.addr %s137, 8
          %s139 = scalar_lea.vmem [#allocation5], %s138
          %s141 = ssub.s32 128, 128
          %142 = vsyncadd %s136, %s141
          %s143 = smul.addr %s17, 128
          %s144 = scalar_lea.hbm %s1, %s143
          %s146 = sshll.u32 %s139, 4
          %s147 = int_to_ptr.vmem [resolvable:$true] %s146
          %149 = dma.hbm_to_vmem [thread:$0]  %s144, 128, %s147, %s136
        $region24: #{tpu_custom_call.1} parent=15 // pred_fallthru
          _
      $region16: #{tpu_custom_call.1} parent=5 // pred_fallthru
        _
      %p150 = scmp.le.s32.totalorder 1, %s17
      %p151 = scmp.lt.s32.totalorder %s17, 3
      %p152 = pnand %p150, %p151
      %p153 = pneg %p152
      // Predicated region
      $region25: #{tpu_custom_call.1} parent=5 // pred_check
        _
      $region26: #{tpu_custom_call.1} parent=5 // pred_check_branch
        %155 = sbr.rel (%p152) target = $region28
      $region27: #{tpu_custom_call.1} parent=5 // pred_region
        %s156 = ssub.s32 %s17, 1
        %s157 = sand.u32 %s30, 1
        %s158 = scalar_lea.sflag [#allocation3], %s157
        %s159 = sand.u32 %s30, 1
        %s160 = smul.addr %s159, 8
        %s161 = scalar_lea.vmem [#allocation2], %s160
        // Predicated region
        $region29: #{tpu_custom_call.1} parent=27 // pred_check
          %p162 = pneg %p43
        $region30: #{tpu_custom_call.1} parent=27 // pred_check_branch
          %164 = sbr.rel (%p162) target = $region32
        $region31: #{tpu_custom_call.1} parent=27 // pred_region
          %165 = dma.done %s158, 128
        $region32: #{tpu_custom_call.1} parent=27 // pred_fallthru
          _
        %s166 = sand.u32 %s56, 1
        %s167 = scalar_lea.sflag [#allocation6], %s166
        %s168 = sand.u32 %s56, 1
        %s169 = smul.addr %s168, 8
        %s170 = scalar_lea.vmem [#allocation5], %s169
        // Predicated region
        $region33: #{tpu_custom_call.1} parent=27 // pred_check
          %p171 = pneg %p69
        $region34: #{tpu_custom_call.1} parent=27 // pred_check_branch
          %173 = sbr.rel (%p171) target = $region36
        $region35: #{tpu_custom_call.1} parent=27 // pred_region
          %174 = dma.done %s167, 128
        $region36: #{tpu_custom_call.1} parent=27 // pred_fallthru
          _
        %s175 = sand.u32 %s30, 1
        %s176 = scalar_lea.sflag [#allocation3], %s175
        %s177 = sand.u32 %s30, 1
        %s178 = smul.addr %s177, 8
        %s179 = scalar_lea.vmem [#allocation2], %s178
        %p180 = pneg %p43
        %p181 = pneg %p40
        %s182 = sand.u32 %s56, 1
        %s183 = scalar_lea.sflag [#allocation6], %s182
        %s184 = sand.u32 %s56, 1
        %s185 = smul.addr %s184, 8
        %s186 = scalar_lea.vmem [#allocation5], %s185
        %p187 = pneg %p69
        %p188 = pneg %p66
        %p189 = pneg %p95
        %p190 = pneg %p92
        %s191 = sand.u32 %s82, 1
        %s192 = scalar_lea.sflag [#allocation4], %s191
        %s193 = sand.u32 %s82, 1
        %s194 = smul.addr %s193, 8
        %s195 = scalar_lea.vmem [#allocation7], %s194
        %v196 = vld [vmem:[%s161] sm:$0xff]
        %v197 = vld [vmem:[%s170] sm:$0xff]
        %v198 = vand.u32 2147483647, %v196
        %v199 = vsub.f32 0.0, %v198
        %v200 = vmul.f32 %v199, 1.442695
        %v201 = vpow.pop %v200
        %v202 = vadd.f32 %v201, 1.0
        %v203 = vlog2.pop %v202
        %v204 = vmul.f32 %v203, 0.6931472
        %v205 = vmul.f32 -0.5, %v201
        %v206 = vadd.f32 %v205, 1.0
        %v207 = vmul.f32 %v206, %v201
        %v208 = vand.u32 2147483647, %v201
        %vm209 = vcmp.lt.f32.partialorder %v208, 0.0004427343
        %v210 = vsel %vm209, %v207, %v204
        %v211 = vsub.f32 0.0, %v196
        %v212 = vmax.f32 %v211, 0.0
        %v213 = vadd.f32 %v212, %v210
        %v214 = vmin.f32 %v213, 100.0
        %v215 = vmax.f32 %v196, 0.0
        %v216 = vadd.f32 %v215, %v210
        %v217 = vmin.f32 %v216, 100.0
        %v218 = vmul.f32 %v197, %v214
        %v219 = vsub.f32 1.0, %v197
        %v220 = vmul.f32 %v219, %v217
        %v221 = vadd.f32 %v218, %v220
        %v222 = vadd.f32 %v221, 0.0
        %223 = vst [vmem:[%s195] sm:$0xff] %v222
        %s224 = sand.u32 %s82, 1
        %s225 = scalar_lea.sflag [#allocation4], %s224
        %s226 = sand.u32 %s82, 1
        %s227 = smul.addr %s226, 8
        %s228 = scalar_lea.vmem [#allocation7], %s227
        // Predicated region
        $region37: #{tpu_custom_call.1} parent=27 // pred_check
          %p229 = pneg %p92
        $region38: #{tpu_custom_call.1} parent=27 // pred_check_branch
          %231 = sbr.rel (%p229) target = $region40
        $region39: #{tpu_custom_call.1} parent=27 // pred_region
          %s233 = ssub.s32 128, 128
          %234 = vsyncadd %s225, %s233
          %s235 = smul.addr %s22, 128
          %s236 = scalar_lea.hbm %s2, %s235
          %s238 = sshll.u32 %s228, 4
          %s239 = int_to_ptr.vmem [resolvable:$true] %s238
          %241 = dma.vmem_to_hbm [thread:$0]  %s239, 128, %s236, %s225
        $region40: #{tpu_custom_call.1} parent=27 // pred_fallthru
          _
      $region28: #{tpu_custom_call.1} parent=5 // pred_fallthru
        _
      %p242 = scmp.le.s32.totalorder 2, %s17
      // Predicated region
      $region41: #{tpu_custom_call.1} parent=5 // pred_check
        %p243 = pneg %p242
      $region42: #{tpu_custom_call.1} parent=5 // pred_check_branch
        %245 = sbr.rel (%p243) target = $region44
      $region43: #{tpu_custom_call.1} parent=5 // pred_region
        %s246 = ssub.s32 %s17, 2
        // Predicated region
        $region45: #{tpu_custom_call.1} parent=43 // pred_check
          %p247 = pneg %p98
        $region46: #{tpu_custom_call.1} parent=43 // pred_check_branch
          %249 = sbr.rel (%p247) target = $region48
        $region47: #{tpu_custom_call.1} parent=43 // pred_region
          %s250 = sand.u32 %s83, 1
          %s251 = scalar_lea.sflag [#allocation4], %s250
          %s252 = sand.u32 %s83, 1
          %s253 = smul.addr %s252, 8
          %s254 = scalar_lea.vmem [#allocation7], %s253
          %255 = dma.done %s251, 128
        $region48: #{tpu_custom_call.1} parent=43 // pred_fallthru
          _
      $region44: #{tpu_custom_call.1} parent=5 // pred_fallthru
        _
    $region6: #{tpu_custom_call.1} parent=1 // loop_footer
      %s21 = sadd.s32 1, %s17
    $region7: #{tpu_custom_call.1} parent=1 // loop_footer_branch
      %16 = sbr.rel target = $region3
    $region8: #{tpu_custom_call.1} parent=1 // loop_exit
      _
    %256 = vsyncpa [#allocation3], 1
    %s257 = scalar_lea.sflag [#allocation3], 1
    %258 = vsyncpa %s257, 1
    %259 = vsyncpa [#allocation6], 1
    %s260 = scalar_lea.sflag [#allocation6], 1
    %261 = vsyncpa %s260, 1
    %262 = vsyncpa [#allocation4], 1
    %s263 = scalar_lea.sflag [#allocation4], 1
    %264 = vsyncpa %s263, 1

</llo_original>
